<compile_context>
chip_gen: v5e
topology: v5e:2x2
jax: 0.10.0
libtpu: 0.0.40
codegen_flags: <defaults>
</compile_context>

<pallas_src>
import functools
import math

import jax
import jax.numpy as jnp
from jax import lax
from jax.experimental import pallas as pl
from jax.experimental.pallas import tpu as pltpu

_BN_EPS = 1e-5
_LRELU_SLOPE = 0.2
_TR = 512                       # row tile for (rows, 128) scalar reductions
_PERP_TP = 512                  # perplexity row tile (keeps one-hot in registers)


def _round_up(x, m):
    return ((x + m - 1) // m) * m


# --------------------------- Pallas kernels ---------------------------------

def _fused_conv_kernel(x_ref, w_ref, b_ref, *refs, offs, ohw, wz, ow, chunk,
                       use_act, compute_stats):
    """Fused conv-as-shifted-matmuls for one image.

    x_ref : (1, Hz*Wz + KW-1, Cz) bf16  -- padded / s2d'd NHWC image, flattened.
    w_ref : (KH*KW, Cz, OC) bf16        -- per-tap weight matrices.
    b_ref : (1, OC) f32.
    Outputs: y (1, OH*Wz, OC) [+ per-image s, ss (1, 1, OC) when compute_stats].
    Scratch: fp32 accumulator (chunk, OC).
    Rows r of y with (r % Wz) >= OW are wrap-around garbage (masked from stats,
    sliced off outside).
    """
    if compute_stats:
        y_ref, s_ref, ss_ref, acc_ref = refs
        s_ref[...] = jnp.zeros_like(s_ref)
        ss_ref[...] = jnp.zeros_like(ss_ref)
    else:
        y_ref, acc_ref = refs

    m0 = 0
    while m0 < ohw:                                   # static Python loop
        length = min(chunk, ohw - m0)
        for k, off in enumerate(offs):                # static: KH*KW taps
            part = jnp.dot(x_ref[0, pl.ds(off + m0, length), :], w_ref[k],
                           preferred_element_type=jnp.float32)
            if k == 0:
                acc_ref[pl.ds(0, length), :] = part
            else:
                acc_ref[pl.ds(0, length), :] += part
        y32 = acc_ref[pl.ds(0, length), :] + b_ref[...]
        if compute_stats:
            # mask the wrap-around columns out of the BatchNorm statistics
            col = (lax.broadcasted_iota(jnp.int32, (length, y32.shape[-1]), 0)
                   + m0) % wz
            ym = jnp.where(col < ow, y32, 0.0)
            s_ref[0, :, :] += jnp.sum(ym, axis=0, keepdims=True)
            ss_ref[0, :, :] += jnp.sum(ym * ym, axis=0, keepdims=True)
        if use_act:
            y32 = jnp.where(y32 > 0, y32, _LRELU_SLOPE * y32)
        y_ref[0, pl.ds(m0, length), :] = y32.astype(y_ref.dtype)
        m0 += length


def _affine_act_kernel(y_ref, scale_ref, shift_ref, o_ref, *, ohw, chunk, use_act):
    """Pass 2 of BN layers: y*scale + shift (folded BN) + LeakyReLU (fp32 math)."""
    m0 = 0
    while m0 < ohw:
        length = min(chunk, ohw - m0)
        y = y_ref[0, pl.ds(m0, length), :].astype(jnp.float32)
        y = y * scale_ref[0] + shift_ref[0]
        if use_act:
            y = jnp.where(y > 0, y, _LRELU_SLOPE * y)
        o_ref[0, pl.ds(m0, length), :] = y.astype(o_ref.dtype)
        m0 += length


def _pixel_sum_kernel(x_ref, y_ref, o_ref, acc_ref, *, pixel, n_real):
    """Tiled L1/L2 reduction; padded elements are zero in both -> no bias."""
    i = pl.program_id(0)

    @pl.when(i == 0)
    def _():
        acc_ref[0] = 0.0

    d = x_ref[...] - y_ref[...]
    d = jnp.abs(d) if pixel == 'l1' else d * d
    acc_ref[0] += jnp.sum(d)

    @pl.when(i == pl.num_programs(0) - 1)
    def _():
        o_ref[0, 0] = acc_ref[0] / n_real


def _mean_sum_kernel(x_ref, o_ref, acc_ref, *, n_real):
    i = pl.program_id(0)

    @pl.when(i == 0)
    def _():
        acc_ref[0] = 0.0

    acc_ref[0] += jnp.sum(x_ref[...])

    @pl.when(i == pl.num_programs(0) - 1)
    def _():
        o_ref[0, 0] = acc_ref[0] / n_real


def _disc_stats_kernel(r_ref, f_ref, d_ref, mr_ref, mf_ref, acc_ref, *,
                       disc_loss, n_real, loss_corr_r, loss_corr_f,
                       mean_corr_r, mean_corr_f):
    """Fused discriminator reductions: hinge/vanilla d-loss, mean(real), mean(fake)."""
    i = pl.program_id(0)

    @pl.when(i == 0)
    def _():
        for j in range(4):
            acc_ref[j] = 0.0

    r = r_ref[...]
    f = f_ref[...]
    if disc_loss == 'hinge':
        lr = jnp.maximum(1.0 - r, 0.0)
        lf = jnp.maximum(1.0 + f, 0.0)
    else:  # vanilla: softplus(-r), softplus(f) (numerically stable)
        lr = jnp.maximum(-r, 0.0) + jnp.log(1.0 + jnp.exp(-jnp.abs(r)))
        lf = jnp.maximum(f, 0.0) + jnp.log(1.0 + jnp.exp(-jnp.abs(f)))
    acc_ref[0] += jnp.sum(lr)
    acc_ref[1] += jnp.sum(lf)
    acc_ref[2] += jnp.sum(r)
    acc_ref[3] += jnp.sum(f)

    @pl.when(i == pl.num_programs(0) - 1)
    def _():
        d_ref[0, 0] = 0.5 * ((acc_ref[0] - loss_corr_r) / n_real
                             + (acc_ref[1] - loss_corr_f) / n_real)
        mr_ref[0, 0] = (acc_ref[2] - mean_corr_r) / n_real
        mf_ref[0, 0] = (acc_ref[3] - mean_corr_f) / n_real


def _perplexity_kernel(idx_ref, perp_ref, use_ref, cnt_ref, *, n_embed_pad, p_real):
    """Tiled histogram over P (codebook on the lane axis); padded idx == -1 never
    matches, padded embed columns stay at zero count."""
    i = pl.program_id(0)

    @pl.when(i == 0)
    def _():
        cnt_ref[...] = jnp.zeros_like(cnt_ref)

    idx = idx_ref[...]                                            # (TP, 1) int32
    iota = lax.broadcasted_iota(jnp.int32, (idx.shape[0], n_embed_pad), 1)
    onehot = (idx == iota).astype(jnp.float32)
    cnt_ref[...] += jnp.sum(onehot, axis=0, keepdims=True)

    @pl.when(i == pl.num_programs(0) - 1)
    def _():
        avg = cnt_ref[...] / p_real
        ent = -jnp.sum(avg * jnp.log(avg + 1e-10))
        perp_ref[0, 0] = jnp.exp(ent)
        use_ref[0, 0] = jnp.sum((avg > 0.0).astype(jnp.float32))


# --------------------------- Pallas wrappers --------------------------------

def _clamp_vmem(need_bytes):
    # per-call right-sizing; cap at 64 MiB so v7x (64 MiB / TC) stays safe
    return int(min(max(need_bytes + (4 << 20), 8 << 20), 64 << 20))


def _pick_chunk(ohw, cz, oc):
    """Bigger row chunks when K (=Cz) is small so each matmul step moves >=~2 MiB,
    while keeping the fp32 accumulator scratch <= ~4 MiB."""
    target = max(512, (2 << 20) // max(cz * 2, 1))
    target = min(target, 4096, max(512, (4 << 20) // max(oc * 4, 1)))
    if ohw <= target:
        return ohw
    return max(8, (target // 8) * 8)


def _fused_conv_layer(x_flat, w, b, *, offs, ohw, wz, ow, use_act,
                      compute_stats, out_dtype):
    n, rows, cz = x_flat.shape
    kk, _, oc = w.shape
    chunk = _pick_chunk(ohw, cz, oc)

    out_isz = jnp.dtype(out_dtype).itemsize
    need = 2 * (rows * cz * 2 + kk * cz * oc * 2 + oc * 4
                + ohw * oc * out_isz + (2 * oc * 4 if compute_stats else 0))
    need += chunk * oc * 4
    limit = _clamp_vmem(need)

    kern = functools.partial(_fused_conv_kernel, offs=offs, ohw=ohw, wz=wz, ow=ow,
                             chunk=chunk, use_act=use_act,
                             compute_stats=compute_stats)

    in_specs = [pl.BlockSpec((1, rows, cz), lambda i: (i, 0, 0)),
                pl.BlockSpec((kk, cz, oc), lambda i: (0, 0, 0)),
                pl.BlockSpec((1, oc), lambda i: (0, 0))]
    y_spec = pl.BlockSpec((1, ohw, oc), lambda i: (i, 0, 0))
    y_shape = jax.ShapeDtypeStruct((n, ohw, oc), out_dtype)

    if compute_stats:
        st_spec = pl.BlockSpec((1, 1, oc), lambda i: (i, 0, 0))
        out_shape = (y_shape,
                     jax.ShapeDtypeStruct((n, 1, oc), jnp.float32),
                     jax.ShapeDtypeStruct((n, 1, oc), jnp.float32))
        out_specs = (y_spec, st_spec, st_spec)
    else:
        out_shape = y_shape
        out_specs = y_spec

    return pl.pallas_call(
        kern,
        out_shape=out_shape,
        grid_spec=pltpu.PrefetchScalarGridSpec(
            num_scalar_prefetch=0, grid=(n,),
            in_specs=in_specs,
            out_specs=out_specs,
            scratch_shapes=[pltpu.VMEM((chunk, oc), jnp.float32)]),
        compiler_params=pltpu.CompilerParams(
            dimension_semantics=("parallel",),     # per-image -> v7x dual-TC friendly
            vmem_limit_bytes=limit),
    )(x_flat, w, b)


def _affine_act(y, scale, shift, use_act, out_dtype):
    n, ohw, oc = y.shape
    chunk = ohw if ohw <= 2048 else 2048
    out_isz = jnp.dtype(out_dtype).itemsize
    limit = _clamp_vmem(2 * (ohw * oc * 2 + 2 * oc * 4 + ohw * oc * out_isz))
    kern = functools.partial(_affine_act_kernel, ohw=ohw, chunk=chunk, use_act=use_act)
    return pl.pallas_call(
        kern,
        out_shape=jax.ShapeDtypeStruct((n, ohw, oc), out_dtype),
        grid_spec=pltpu.PrefetchScalarGridSpec(
            num_scalar_prefetch=0, grid=(n,),
            in_specs=[pl.BlockSpec((1, ohw, oc), lambda i: (i, 0, 0)),
                      pl.BlockSpec((1, 1, oc), lambda i: (0, 0, 0)),
                      pl.BlockSpec((1, 1, oc), lambda i: (0, 0, 0))],
            out_specs=pl.BlockSpec((1, ohw, oc), lambda i: (i, 0, 0))),
        compiler_params=pltpu.CompilerParams(
            dimension_semantics=("parallel",),
            vmem_limit_bytes=limit),
    )(y, scale, shift)


def _flatten_pad_2d(x, pad_value):
    """Flatten to a lane-dense (rows, 128) fp32 array, rows % 8 == 0, tiled by _TR."""
    flat = x.reshape(-1).astype(jnp.float32)
    n = int(flat.shape[0])
    rows = _round_up(max(1, -(-n // 128)), 8)
    tr = min(_TR, rows)
    rows_p = _round_up(rows, tr)
    total = rows_p * 128
    flat = jnp.pad(flat, (0, total - n), constant_values=pad_value)
    return flat.reshape(rows_p, 128), tr, n, total - n


def _pixel_loss_pallas(x, y, pixel):
    x2, tr, n, _ = _flatten_pad_2d(x, 0.0)
    y2, _, _, _ = _flatten_pad_2d(y, 0.0)
    kern = functools.partial(_pixel_sum_kernel, pixel=pixel, n_real=float(n))
    out = pl.pallas_call(
        kern,
        out_shape=jax.ShapeDtypeStruct((1, 1), jnp.float32),
        grid_spec=pltpu.PrefetchScalarGridSpec(
            num_scalar_prefetch=0, grid=(x2.shape[0] // tr,),
            in_specs=[pl.BlockSpec((tr, 128), lambda i: (i, 0)),
                      pl.BlockSpec((tr, 128), lambda i: (i, 0))],
            out_specs=pl.BlockSpec(memory_space=pltpu.MemorySpace.SMEM),
            scratch_shapes=[pltpu.SMEM((1,), jnp.float32)]),
        compiler_params=pltpu.CompilerParams(dimension_semantics=("arbitrary",)),
    )(x2, y2)
    return out[0, 0]


def _mean_pallas(x):
    x2, tr, n, _ = _flatten_pad_2d(x, 0.0)
    kern = functools.partial(_mean_sum_kernel, n_real=float(n))
    out = pl.pallas_call(
        kern,
        out_shape=jax.ShapeDtypeStruct((1, 1), jnp.float32),
        grid_spec=pltpu.PrefetchScalarGridSpec(
            num_scalar_prefetch=0, grid=(x2.shape[0] // tr,),
            in_specs=[pl.BlockSpec((tr, 128), lambda i: (i, 0))],
            out_specs=pl.BlockSpec(memory_space=pltpu.MemorySpace.SMEM),
            scratch_shapes=[pltpu.SMEM((1,), jnp.float32)]),
        compiler_params=pltpu.CompilerParams(dimension_semantics=("arbitrary",)),
    )(x2)
    return out[0, 0]


def _disc_loss_stats_pallas(logits_real, logits_fake, disc_loss):
    """One fused pass: d_loss (hinge or vanilla), mean(real), mean(fake)."""
    if disc_loss == 'hinge':
        pad_r, pad_f = 1.0, -1.0
        loss_pad_r = max(1.0 - pad_r, 0.0)   # 0: padded entries contribute nothing
        loss_pad_f = max(1.0 + pad_f, 0.0)   # 0
    else:  # vanilla
        pad_r, pad_f = 0.0, 0.0
        loss_pad_r = math.log(2.0)
        loss_pad_f = math.log(2.0)
    r2, tr, n, n_pad = _flatten_pad_2d(logits_real, pad_r)
    f2, _, _, _ = _flatten_pad_2d(logits_fake, pad_f)
    kern = functools.partial(
        _disc_stats_kernel, disc_loss=disc_loss, n_real=float(n),
        loss_corr_r=float(n_pad) * loss_pad_r, loss_corr_f=float(n_pad) * loss_pad_f,
        mean_corr_r=float(n_pad) * pad_r, mean_corr_f=float(n_pad) * pad_f)
    d, mr, mf = pl.pallas_call(
        kern,
        out_shape=(jax.ShapeDtypeStruct((1, 1), jnp.float32),
                   jax.ShapeDtypeStruct((1, 1), jnp.float32),
                   jax.ShapeDtypeStruct((1, 1), jnp.float32)),
        grid_spec=pltpu.PrefetchScalarGridSpec(
            num_scalar_prefetch=0, grid=(r2.shape[0] // tr,),
            in_specs=[pl.BlockSpec((tr, 128), lambda i: (i, 0)),
                      pl.BlockSpec((tr, 128), lambda i: (i, 0))],
            out_specs=(pl.BlockSpec(memory_space=pltpu.MemorySpace.SMEM),
                       pl.BlockSpec(memory_space=pltpu.MemorySpace.SMEM),
                       pl.BlockSpec(memory_space=pltpu.MemorySpace.SMEM)),
            scratch_shapes=[pltpu.SMEM((4,), jnp.float32)]),
        compiler_params=pltpu.CompilerParams(dimension_semantics=("arbitrary",)),
    )(r2, f2)
    return d[0, 0], mr[0, 0], mf[0, 0]


def measure_perplexity_pallas(predicted_indices, n_embed):
    idx = predicted_indices.reshape(-1).astype(jnp.int32)
    p_real = int(idx.shape[0])
    nep = _round_up(max(int(n_embed), 1), 128)
    pr = _round_up(p_real, 8)
    tp = min(_PERP_TP, pr)                     # small tile -> one-hot stays in vregs
    pp = _round_up(pr, tp)
    idx2 = jnp.pad(idx, (0, pp - p_real), constant_values=-1).reshape(pp, 1)
    kern = functools.partial(_perplexity_kernel, n_embed_pad=nep, p_real=float(p_real))
    perp, use = pl.pallas_call(
        kern,
        out_shape=(jax.ShapeDtypeStruct((1, 1), jnp.float32),
                   jax.ShapeDtypeStruct((1, 1), jnp.float32)),
        grid_spec=pltpu.PrefetchScalarGridSpec(
            num_scalar_prefetch=0, grid=(pp // tp,),
            in_specs=[pl.BlockSpec((tp, 1), lambda i: (i, 0))],
            out_specs=(pl.BlockSpec(memory_space=pltpu.MemorySpace.SMEM),
                       pl.BlockSpec(memory_space=pltpu.MemorySpace.SMEM)),
            scratch_shapes=[pltpu.VMEM((1, nep), jnp.float32)]),
        compiler_params=pltpu.CompilerParams(dimension_semantics=("arbitrary",)),
    )(idx2)
    return perp[0, 0], use[0, 0]


# --------------------------- JAX glue ----------------------------------------

def adopt_weight(weight, global_step, threshold=0, value=0.0):
    if isinstance(global_step, (int, float)):
        return value if global_step < threshold else weight
    return jnp.where(global_step < threshold, value, weight)


def init_discriminator_params(key, input_nc=1, ndf=64, n_layers=3):
    """NLayerDiscriminator(input_nc, ndf, n_layers) with weights_init (N(0,0.02) convs).
    stride-2 layers are pre-folded into 2x2 convs over the space-to-depth input;
    stride-1 layers keep the 4x4 taps.  Weights stored as (KH*KW, Cz, OC) bf16."""
    cfgs = [dict(cin=input_nc, cout=ndf, stride=2, use_bn=False, use_act=True)]
    nf = 1
    for n in range(1, n_layers):
        nf_prev, nf = nf, min(2 ** n, 8)
        cfgs.append(dict(cin=ndf * nf_prev, cout=ndf * nf, stride=2, use_bn=True, use_act=True))
    nf_prev, nf = nf, min(2 ** n_layers, 8)
    cfgs.append(dict(cin=ndf * nf_prev, cout=ndf * nf, stride=1, use_bn=True, use_act=True))
    cfgs.append(dict(cin=ndf * nf, cout=1, stride=1, use_bn=False, use_act=False))

    params = []
    for cfg in cfgs:
        key, k1, k2 = jax.random.split(key, 3)
        oc, cin = cfg['cout'], cfg['cin']
        w = 0.02 * jax.random.normal(k1, (oc, cin, 4, 4), jnp.float32)
        if cfg['stride'] == 2:
            # 4x4/stride-2 conv on x_pad  ==  2x2/stride-1 conv on space-to-depth(x_pad)
            wr = w.reshape(oc, cin, 2, 2, 2, 2)               # (oc, c, i, di, j, dj)
            wr = jnp.transpose(wr, (2, 4, 3, 5, 1, 0))        # (i, j, di, dj, c, oc)
            wk = wr.reshape(4, 4 * cin, oc)                   # tap k = i*2 + j
        else:
            wk = jnp.transpose(w, (2, 3, 1, 0)).reshape(16, cin, oc)   # k = kh*4 + kw
        b = jnp.zeros((1, oc), jnp.float32)
        if cfg['use_bn']:
            gamma = (1.0 + 0.02 * jax.random.normal(k2, (oc,), jnp.float32)).reshape(1, 1, oc)
        else:
            gamma = jnp.ones((1, 1, oc), jnp.float32)
        beta = jnp.zeros((1, 1, oc), jnp.float32)
        params.append(dict(cfg=cfg, w=wk.astype(jnp.bfloat16), b=b,
                           gamma=gamma, beta=beta))
    return params


def discriminator_forward(params, x_nchw):
    """x: (N, C, H, W) NCHW at the API boundary -> patch-GAN logits (N, H', W', 1) f32."""
    x = jnp.transpose(x_nchw, (0, 2, 3, 1)).astype(jnp.bfloat16)   # NHWC bf16
    n_layers = len(params)
    # TODO(synk): very large spatial sizes would need row-tiling of the per-image
    # block (manual-DMA halo windows); whole-image blocks are fine for typical
    # PatchGAN inputs and avoid any im2col HBM materialization.
    for li, p in enumerate(params):
        cfg = p['cfg']
        n, h, w_, c = x.shape
        xp = jnp.pad(x, ((0, 0), (1, 1), (1, 1), (0, 0)))
        if cfg['stride'] == 2:
            assert h % 2 == 0 and w_ % 2 == 0  # TODO(synk): odd sizes need window drop
            hz, wz = (h + 2) // 2, (w_ + 2) // 2
            xz = xp.reshape(n, hz, 2, wz, 2, c)
            xz = jnp.transpose(xz, (0, 1, 3, 2, 4, 5)).reshape(n, hz, wz, 4 * c)
            ksz = 2
        else:
            hz, wz = h + 2, w_ + 2
            xz = xp
            ksz = 4
        cz = xz.shape[-1]
        oh, ow = hz - ksz + 1, wz - ksz + 1
        ohw = oh * wz
        offs = tuple(i * wz + j for i in range(ksz) for j in range(ksz))
        x_flat = xz.reshape(n, hz * wz, cz)
        x_flat = jnp.pad(x_flat, ((0, 0), (0, ksz - 1), (0, 0)))   # last-row wrap pad

        oc = cfg['cout']
        last = (li == n_layers - 1)
        out_dtype = jnp.float32 if last else jnp.bfloat16

        if cfg['use_bn']:
            # pass 1: fused conv + per-image BN partial stats (parallel grid axis)
            y, s, ss = _fused_conv_layer(
                x_flat, p['w'], p['b'], offs=offs, ohw=ohw, wz=wz, ow=ow,
                use_act=False, compute_stats=True, out_dtype=jnp.bfloat16)
            cnt = float(n * oh * ow)
            mu = jnp.sum(s, axis=0, keepdims=True) / cnt                   # (1,1,OC)
            # TODO(synk): sum-of-squares variance can lose precision for huge M;
            # a centered two-level combine would match torch BN even more tightly.
            var = jnp.maximum(jnp.sum(ss, axis=0, keepdims=True) / cnt - mu * mu, 0.0)
            scale = p['gamma'] * lax.rsqrt(var + _BN_EPS)
            shift = p['beta'] - mu * scale
            # pass 2: folded BN affine + LeakyReLU (fp32 math, bf16 out)
            y = _affine_act(y, scale, shift, cfg['use_act'], out_dtype)
        else:
            y = _fused_conv_layer(
                x_flat, p['w'], p['b'], offs=offs, ohw=ohw, wz=wz, ow=ow,
                use_act=cfg['use_act'], compute_stats=False, out_dtype=out_dtype)

        # drop the wrap-around columns -> valid NHWC for the next layer / output
        x = y.reshape(n, oh, wz, oc)[:, :, :ow, :]
    return x


# --------------------------- the loss module ---------------------------------

class VQVAELossPallas:
    def __init__(self, disc_start=0, codebook_weight=1.0, pixelloss_weight=1.0,
                 disc_num_layers=3, disc_in_channels=1, disc_factor=1.0,
                 disc_weight=1.0, htr_weight=1.0, writer_weight=1.0,
                 disc_ndf=64, disc_loss='hinge', pixel_loss='l1',
                 n_classes=None, seed=42):
        assert disc_loss in ['hinge', 'vanilla']
        assert pixel_loss in ['l1', 'l2']
        self.codebook_weight = codebook_weight
        self.pixel_weight = pixelloss_weight
        self.htr_weight = htr_weight
        self.writer_weight = writer_weight
        self.discriminator_iter_start = disc_start
        self.disc_factor = disc_factor
        self.discriminator_weight = disc_weight
        self.n_classes = n_classes
        self.disc_loss_type = disc_loss
        self.pixel_loss_type = pixel_loss
        # checkpoint_htrw=None path of the reference => htrw_loss is None,
        # so htr / writer / prime / cycle losses are exactly 0.
        self.disc_params = init_discriminator_params(
            jax.random.PRNGKey(seed), disc_in_channels, disc_ndf, disc_num_layers)

    def forward(self, codebook_loss, inputs, reconstructions, sample=None, sample2=None,
                optimizer_idx=0, global_step=0, writers=None, txt_logits=None,
                txt_length=None, last_layer=None, cond=None, split='train',
                predicted_indices=None, tgt_pad_mask=None, s_mask=None,
                src_key_padding=None):
        if codebook_loss is None:
            codebook_loss = jnp.array([0.0], jnp.float32)
        codebook_loss = jnp.asarray(codebook_loss, jnp.float32)

        zero = jnp.float32(0.0)
        htr_loss = writer_loss = prime_loss = cycle_loss = zero
        cer = acc = cer_prime = htr_rec_loss = zero

        disc_factor = adopt_weight(self.disc_factor, global_step,
                                   threshold=self.discriminator_iter_start)

        if optimizer_idx == 0:
            # rec / nll loss (elementwise pixel loss + mean) -- only needed here
            nll_loss = _pixel_loss_pallas(inputs, reconstructions, self.pixel_loss_type)
            recWHTR_loss = (nll_loss + self.htr_weight * htr_loss
                            + self.writer_weight * writer_loss + prime_loss)

            logits_fake = discriminator_forward(self.disc_params, reconstructions)
            g_loss = -_mean_pallas(logits_fake)
            # TODO(synk): calculate_adaptive_weight needs autograd through the generator's
            # last layer (not available here); mirrors the eval-mode fallback d_weight = 0.
            d_weight = jnp.float32(0.0)
            loss = (recWHTR_loss + d_weight * disc_factor * g_loss
                    + self.codebook_weight * jnp.mean(codebook_loss))
            log = {
                f'{split}/total_loss': loss,
                f'{split}/quant_loss': jnp.mean(codebook_loss),
                f'{split}/nll_loss': nll_loss,
                f'{split}/rec_loss': nll_loss,
                f'{split}/d_weight': d_weight,
                f'{split}/disc_factor': jnp.asarray(disc_factor, jnp.float32),
                f'{split}/g_loss': g_loss,
                f'{split}/writer_loss': writer_loss,
                f'{split}/cycle_loss': cycle_loss,
                f'{split}/recWHTR_loss': recWHTR_loss,
                f'{split}/HTR_loss': htr_loss,
                f'{split}/HTR_rec_loss': htr_rec_loss,
                f'{split}/cer': cer,
                f'{split}/acc': acc,
                f'{split}/prime_cer': cer_prime,
                f'{split}/prime_loss': prime_loss,
            }
            if predicted_indices is not None:
                assert self.n_classes is not None
                perplexity, cluster_usage = measure_perplexity_pallas(
                    predicted_indices, self.n_classes)
                log[f'{split}/perplexity'] = perplexity
                log[f'{split}/cluster_usage'] = cluster_usage
            return loss, log

        if optimizer_idx == 1:
            # (real and fake go through separate forwards so BN batch statistics
            # match the PyTorch reference exactly)
            logits_real = discriminator_forward(self.disc_params, inputs)
            logits_fake = discriminator_forward(self.disc_params, reconstructions)
            d_loss_raw, mean_real, mean_fake = _disc_loss_stats_pallas(
                logits_real, logits_fake, self.disc_loss_type)
            d_loss = jnp.asarray(disc_factor, jnp.float32) * d_loss_raw
            log = {
                f'{split}/disc_loss': d_loss,
                f'{split}/logits_real': mean_real,
                f'{split}/logits_fake': mean_fake,
            }
            return d_loss, log


# --------------------------- demo ---------------------------------------------

if __name__ == "__main__":
    key = jax.random.PRNGKey(0)
    k1, k2, k3 = jax.random.split(key, 3)

    N, C, H, W = 2, 1, 32, 32                    # NCHW, disc_in_channels = 1
    inputs = jax.random.normal(k1, (N, C, H, W), jnp.float32)
    reconstructions = inputs + 0.1 * jax.random.normal(k2, (N, C, H, W), jnp.float32)
    codebook_loss = jnp.array([0.05], jnp.float32)
    predicted_indices = jax.random.randint(k3, (N, 64), 0, 16)

    loss_mod = VQVAELossPallas(disc_start=0, n_classes=16)

    loss, log = loss_mod.forward(codebook_loss, inputs, reconstructions,
                                 optimizer_idx=0, global_step=1,
                                 predicted_indices=predicted_indices)
    d_loss, d_log = loss_mod.forward(codebook_loss, inputs, reconstructions,
                                     optimizer_idx=1, global_step=1)

    jax.block_until_ready((loss, d_loss, log, d_log))
    print("KERNEL_OK")
</pallas_src>

<mosaic_0001>
module attributes {stable_mosaic.version = 11 : i64} {
  func.func @_pixel_sum_kernel(%arg0: i32, %arg1: memref<16x128xf32, #tpu.memory_space<vmem>>, %arg2: memref<16x128xf32, #tpu.memory_space<vmem>>, %arg3: memref<1x1xf32, #tpu.memory_space<smem>>, %arg4: memref<1xf32, #tpu.memory_space<smem>>) attributes {dimension_semantics = [#tpu.dimension_semantics<arbitrary>], iteration_bounds = array<i64: 1>, scalar_prefetch = 0 : i64, scratch_operands = 1 : i64, tpu.core_type = #tpu.core_type<tc>, window_params = [{transform_indices = @transform_0, window_bounds = array<i64: 16, 128>}, {transform_indices = @transform_1, window_bounds = array<i64: 16, 128>}, {transform_indices = @transform_2, window_bounds = array<i64: 1, 1>}]} {
    %c0_i32 = arith.constant 0 : i32
    %0 = arith.cmpi eq, %arg0, %c0_i32 : i32
    %1 = arith.extui %0 : i1 to i32
    %c0_i32_0 = arith.constant 0 : i32
    %2 = arith.cmpi ne, %1, %c0_i32_0 : i32
    scf.if %2 {
      %cst_8 = arith.constant 0.000000e+00 : f32
      %c0_9 = arith.constant 0 : index
      %17 = memref.load %arg4[%c0_9] : memref<1xf32, #tpu.memory_space<smem>>
      memref.store %cst_8, %arg4[%c0_9] : memref<1xf32, #tpu.memory_space<smem>>
    } else {
    }
    %c0 = arith.constant 0 : index
    %c0_1 = arith.constant 0 : index
    %3 = vector.load %arg1[%c0, %c0_1] : memref<16x128xf32, #tpu.memory_space<vmem>>, vector<16x128xf32>
    %c0_2 = arith.constant 0 : index
    %c0_3 = arith.constant 0 : index
    %4 = vector.load %arg2[%c0_2, %c0_3] : memref<16x128xf32, #tpu.memory_space<vmem>>, vector<16x128xf32>
    %5 = arith.subf %3, %4 : vector<16x128xf32>
    %6 = math.absf %5 : vector<16x128xf32>
    %c0_4 = arith.constant 0 : index
    %7 = memref.load %arg4[%c0_4] : memref<1xf32, #tpu.memory_space<smem>>
    %8 = vector.shape_cast %6 : vector<16x128xf32> to vector<1x16x128xf32>
    %cst = arith.constant dense<0.000000e+00> : vector<1xf32>
    %9 = vector.multi_reduction <add>, %8, %cst [1, 2] : vector<1x16x128xf32> to vector<1xf32>
    %10 = vector.shape_cast %9 : vector<1xf32> to vector<1x1x1xf32>
    %11 = vector.extract %10[0, 0, 0] : f32 from vector<1x1x1xf32>
    %12 = arith.addf %7, %11 : f32
    %c0_5 = arith.constant 0 : index
    %13 = memref.load %arg4[%c0_5] : memref<1xf32, #tpu.memory_space<smem>>
    memref.store %12, %arg4[%c0_5] : memref<1xf32, #tpu.memory_space<smem>>
    %c0_i32_6 = arith.constant 0 : i32
    %14 = arith.cmpi eq, %arg0, %c0_i32_6 : i32
    %15 = arith.extui %14 : i1 to i32
    %c0_i32_7 = arith.constant 0 : i32
    %16 = arith.cmpi ne, %15, %c0_i32_7 : i32
    scf.if %16 {
      %c0_8 = arith.constant 0 : index
      %17 = memref.load %arg4[%c0_8] : memref<1xf32, #tpu.memory_space<smem>>
      %cst_9 = arith.constant 2.048000e+03 : f32
      %18 = arith.divf %17, %cst_9 : f32
      %c0_10 = arith.constant 0 : index
      %c0_11 = arith.constant 0 : index
      %19 = memref.load %arg3[%c0_10, %c0_11] : memref<1x1xf32, #tpu.memory_space<smem>>
      memref.store %18, %arg3[%c0_10, %c0_11] : memref<1x1xf32, #tpu.memory_space<smem>>
    } else {
    }
    return
  }
  func.func @transform_0(%arg0: i32) -> (i32, i32) {
    %c0_i32 = arith.constant 0 : i32
    %c0_i32_0 = arith.constant 0 : i32
    return %arg0, %c0_i32 : i32, i32
  }
  func.func @transform_1(%arg0: i32) -> (i32, i32) {
    %c0_i32 = arith.constant 0 : i32
    %c0_i32_0 = arith.constant 0 : i32
    return %arg0, %c0_i32 : i32, i32
  }
  func.func @transform_2(%arg0: i32) -> (i32, i32) {
    %c0_i32 = arith.constant 0 : i32
    %c0_i32_0 = arith.constant 0 : i32
    %c0_i32_1 = arith.constant 0 : i32
    return %c0_i32, %c0_i32_0 : i32, i32
  }
}

</mosaic_0001>

<llo_original>
// kernel: tpu_custom_call.1
$region0: #{tpu_custom_call.1}
  #allocation0 [shape = 'u32[]', space=smem, size = 0x4, offset = 0x4, fixed_abs, tag = 'smem constant byte address 0x4 - core index']
  #allocation1 [shape = 'u32[72,128]{1,0:T(1,128)}', space=vmem, size = 0x9000, scoped, tag = 'internal scratch']
  #allocation2 [shape = 'f32[1]{0:T(128)}', space=smem, size = 0x200, scoped, tag = 'scratch operand']
  %s0 = inlined_call_operand.hbm [shape: f32[16,128], index: 0, kind: input, shape index: {}]
  %s1 = inlined_call_operand.hbm [shape: f32[16,128], index: 1, kind: input, shape index: {}]
  %s2 = inlined_call_operand.hbm [shape: f32[1,1], index: 2, kind: output, shape index: {}]
  %s3 = sld [smem:[#allocation0]]
  $region34: #{tpu_custom_call.1} parent=0
    _
  %s5 = ssub.s32 1, %s3
  %s6 = scalar_select 0, %s5, %s3
  $region1: #{tpu_custom_call.1} parent=0
    #allocation3 [shape = 'u8[8192]{0}', space=vmem, size = 0x2000, scoped, tag = 'input window, operand 0, single buffered']
    #allocation4 [shape = 's32[1]{0}', space=sflag, size = 0x4, scoped, tag = 'scoped memory for tpu_custom_call.1']
    #allocation5 [shape = 's32[1]{0}', space=sflag, size = 0x4, scoped, tag = 'scoped memory for tpu_custom_call.1']
    #allocation6 [shape = 'u8[8192]{0}', space=vmem, size = 0x2000, scoped, tag = 'input window, operand 1, single buffered']
    #allocation7 [shape = 's32[1]{0}', space=sflag, size = 0x4, scoped, tag = 'scoped memory for tpu_custom_call.1']
    #allocation8 [shape = 'u8[512]{0}', space=smem, size = 0x200, scoped, tag = 'output window, operand 0, single buffered']
    %7 = vsyncpa [#allocation4], 0
    %8 = vsyncpa [#allocation7], 0
    %9 = vsyncpa [#allocation5], 0
    // Predicated region
    $region2: #{tpu_custom_call.1} parent=1 // pred_check
      _
    $region3: #{tpu_custom_call.1} parent=1 // pred_check_branch
      %11 = sbr.rel (0) target = $region5
    $region4: #{tpu_custom_call.1} parent=1 // pred_region
      %13 = vsyncadd [#allocation4], 0
      %s14 = sshll.u32 %s0, 4
      %s15 = int_to_ptr.hbm [resolvable:$true] %s14
      %s16 = sshll.u32 [#allocation3], 4
      %s17 = int_to_ptr.vmem [resolvable:$true] %s16
      %22 = dma.hbm_to_vmem [thread:$0]  %s15, 256, %s17, [#allocation4], 128, 128, 8
    $region5: #{tpu_custom_call.1} parent=1 // pred_fallthru
      _
    // Predicated region
    $region6: #{tpu_custom_call.1} parent=1 // pred_check
      _
    $region7: #{tpu_custom_call.1} parent=1 // pred_check_branch
      %24 = sbr.rel (0) target = $region9
    $region8: #{tpu_custom_call.1} parent=1 // pred_region
      %26 = vsyncadd [#allocation7], 0
      %s27 = sshll.u32 %s1, 4
      %s28 = int_to_ptr.hbm [resolvable:$true] %s27
      %s29 = sshll.u32 [#allocation6], 4
      %s30 = int_to_ptr.vmem [resolvable:$true] %s29
      %35 = dma.hbm_to_vmem [thread:$0]  %s28, 256, %s30, [#allocation7], 128, 128, 8
    $region9: #{tpu_custom_call.1} parent=1 // pred_fallthru
      _
    // Predicated region
    $region10: #{tpu_custom_call.1} parent=1 // pred_check
      _
    $region11: #{tpu_custom_call.1} parent=1 // pred_check_branch
      %37 = sbr.rel (0) target = $region13
    $region12: #{tpu_custom_call.1} parent=1 // pred_region
      %39 = dma.done [#allocation4], 256
    $region13: #{tpu_custom_call.1} parent=1 // pred_fallthru
      _
    // Predicated region
    $region14: #{tpu_custom_call.1} parent=1 // pred_check
      _
    $region15: #{tpu_custom_call.1} parent=1 // pred_check_branch
      %41 = sbr.rel (0) target = $region17
    $region16: #{tpu_custom_call.1} parent=1 // pred_region
      %43 = dma.done [#allocation7], 256
    $region17: #{tpu_custom_call.1} parent=1 // pred_fallthru
      _
    %p44 = scmp.eq.s32.totalorder 0, 0
    // Predicated region
    $region18: #{tpu_custom_call.1} parent=1 // pred_check
      %p45 = pneg %p44
    $region19: #{tpu_custom_call.1} parent=1 // pred_check_branch
      %47 = sbr.rel (%p45) target = $region21
    $region20: #{tpu_custom_call.1} parent=1 // pred_region
      %s48 = scalar_lea.smem [#allocation2], 0
      %49 = sst [smem:[%s48]] 0.0
    $region21: #{tpu_custom_call.1} parent=1 // pred_fallthru
      _
    %v50 = vld [vmem:[#allocation3] sm:$0xff]
    %v51 = vld [vmem:[#allocation3 + $0x8] sm:$0xff]
    %v52 = vld [vmem:[#allocation6] sm:$0xff]
    %v53 = vld [vmem:[#allocation6 + $0x8] sm:$0xff]
    %v54 = vsub.f32 %v50, %v52
    %v55 = vsub.f32 %v51, %v53
    %v56 = vand.u32 2147483647, %v54
    %v57 = vand.u32 2147483647, %v55
    %s58 = sld [smem:[#allocation2]]
    %v59 = vadd.f32 %v56, %v57
    %60 = vadd.xlane.f32.xlu0 %v59
    %v61 = vpop.xlane.xlu0 %60
    %v62 = vrot.slane %v61, 4
    %v63 = vadd.f32 %v61, %v62
    %v64 = vrot.slane %v63, 2
    %v65 = vadd.f32 %v63, %v64
    %v66 = vrot.slane %v65, 1
    %v67 = vadd.f32 %v65, %v66
    %s68 = vtos %v67
    %s69 = sadd.f32 %s58, %s68
    %s70 = scalar_lea.smem [#allocation2], 0
    %71 = sst [smem:[%s70]] %s69
    // Predicated region
    $region22: #{tpu_custom_call.1} parent=1 // pred_check
      %p72 = pneg %p44
    $region23: #{tpu_custom_call.1} parent=1 // pred_check_branch
      %74 = sbr.rel (%p72) target = $region25
    $region24: #{tpu_custom_call.1} parent=1 // pred_region
      %s75 = sld [smem:[#allocation2]]
      %v76 = vrcp.pop 2048.0
      %v77 = vmul.f32 2048.0, %v76
      %v78 = vsub.f32 1.0, %v77
      %v79 = vmul.f32 %v76, %v78
      %v80 = vadd.f32 %v76, %v79
      %vm81 = vweird.f32 %v76
      %v82 = vsel %vm81, %v76, %v80
      %s83 = vtos %v82
      %s84 = smul.f32 %s75, %s83
      %s85 = scalar_lea.smem [#allocation8], 0
      %86 = sst [smem:[%s85]] %s84
    $region25: #{tpu_custom_call.1} parent=1 // pred_fallthru
      _
    // Predicated region
    $region26: #{tpu_custom_call.1} parent=1 // pred_check
      _
    $region27: #{tpu_custom_call.1} parent=1 // pred_check_branch
      %88 = sbr.rel (0) target = $region29
    $region28: #{tpu_custom_call.1} parent=1 // pred_region
      %90 = vsyncadd [#allocation5], 0
      %s92 = sshll.u32 %s2, 4
      %s93 = int_to_ptr.hbm [resolvable:$true] %s92
      %95 = dma.smem_to_hbm [#allocation8], 16, %s93, [#allocation5]
    $region29: #{tpu_custom_call.1} parent=1 // pred_fallthru
      _
    // Predicated region
    $region30: #{tpu_custom_call.1} parent=1 // pred_check
      _
    $region31: #{tpu_custom_call.1} parent=1 // pred_check_branch
      %97 = sbr.rel (0) target = $region33
    $region32: #{tpu_custom_call.1} parent=1 // pred_region
      %99 = dma.done [#allocation5], 16
    $region33: #{tpu_custom_call.1} parent=1 // pred_fallthru
      _
    %100 = sfence
    %101 = vsyncpa [#allocation4], 1
    %102 = vsyncpa [#allocation7], 1
    %103 = vsyncpa [#allocation5], 1

</llo_original>
